<compile_context>
chip_gen: v5e
topology: v5e:2x2
jax: 0.10.0
libtpu: 0.0.40
codegen_flags: <defaults>
</compile_context>

<pallas_src>
import jax
import jax.numpy as jnp
from jax.experimental import pallas as pl
from jax.experimental.pallas import tpu as pltpu


def _round_up(n, m):
    return ((n + m - 1) // m) * m


# ----------------------------------------------------------------------------- kernel
def mu_kernel(x_ref, w1_ref, b1_ref, w2_ref, b2_ref, w3_ref, b3_ref, o_ref):
    # Fully fused forward pass: the 512- and 128-wide hidden activations never
    # leave VMEM.  Matmuls are native bf16 x bf16 on the MXU with f32
    # accumulation; elementwise math (bias, ReLU, tanh) is f32.
    x = x_ref[...].astype(jnp.bfloat16)

    h1 = jnp.dot(x, w1_ref[...], preferred_element_type=jnp.float32)
    h1 = jnp.maximum(h1 + b1_ref[...], 0.0)                 # ReLU (f32)

    h2 = jnp.dot(h1.astype(jnp.bfloat16), w2_ref[...],
                 preferred_element_type=jnp.float32)
    h2 = jnp.maximum(h2 + b2_ref[...], 0.0)                 # ReLU (f32)

    y = jnp.dot(h2.astype(jnp.bfloat16), w3_ref[...],
                preferred_element_type=jnp.float32)
    y = jnp.tanh(y + b3_ref[...])                           # tanh (f32, EUP)

    # Store only the real action_dim columns (masked vst): no padded f32
    # output slab in HBM and no extra XLA slice op in the wrapper.
    o_ref[...] = y[:, :o_ref.shape[-1]].astype(o_ref.dtype)


# ----------------------------------------------------------------------------- wrapper
def mu_forward(x, prepared_params, action_dim, *, tm=512):
    """x: (batch, input_dim) f32.  prepared_params: padded/bf16 params from
    prepare_params.  Returns (batch, action_dim) f32."""
    w1, b1, w2, b2, w3, b3 = prepared_params
    batch, in_dim = x.shape

    # Batch tile: as large as useful (per-grid-step overhead ~0.35 us), but
    # guarantee >= 2 tiles whenever the batch allows so v7x's two TensorCores
    # both get work via dimension_semantics=("parallel",).
    if batch <= 8:
        tm = batch                                   # single full-array tile
    else:
        tm = min(tm, _round_up(pl.cdiv(batch, 2), 8))
    grid = (pl.cdiv(batch, tm),)

    def resident(arr):
        # Full-array block + constant index map -> DMA'd once, VMEM-resident
        # across all batch tiles.
        return pl.BlockSpec(arr.shape, lambda i: (0,) * arr.ndim)

    return pl.pallas_call(
        mu_kernel,
        out_shape=jax.ShapeDtypeStruct((batch, action_dim), jnp.float32),
        grid=grid,
        in_specs=[
            pl.BlockSpec((tm, in_dim), lambda i: (i, 0)),   # x, batch-tiled
            resident(w1), resident(b1),
            resident(w2), resident(b2),
            resident(w3), resident(b3),
        ],
        out_specs=pl.BlockSpec((tm, action_dim), lambda i: (i, 0)),
        compiler_params=pltpu.CompilerParams(
            dimension_semantics=("parallel",),   # shard batch tiles across TCs (v7x)
            vmem_limit_bytes=16 << 20,           # headroom for tm=512 working set
        ),
    )(x, w1, b1, w2, b2, w3, b3)


# ----------------------------------------------------------------------------- params
def init_params(key, input_dim, action_dim):
    """PyTorch-nn.Linear-like uniform(+-1/sqrt(fan_in)) init at logical sizes
    (input_dim->500->128->action_dim), weights stored as (in, out)."""
    dims = [(input_dim, 500), (500, 128), (128, action_dim)]
    params = []
    for fan_in, fan_out in dims:
        kw, kb, key = jax.random.split(key, 3)
        bound = 1.0 / jnp.sqrt(fan_in)
        w = jax.random.uniform(kw, (fan_in, fan_out), jnp.float32, -bound, bound)
        b = jax.random.uniform(kb, (1, fan_out), jnp.float32, -bound, bound)
        params.extend([w, b])
    return tuple(params)


def prepare_params(params, weight_dtype=jnp.bfloat16):
    """Zero-pad hidden 500->512 and the last layer's output to 128 lanes
    (inert padding, sliced off in-kernel before the store); weights cast to
    `weight_dtype` (bf16 = native MXU operand dtype).  Biases stay f32."""
    w1, b1, w2, b2, w3, b3 = params
    in_dim, h1 = w1.shape
    h2 = w2.shape[1]
    act = w3.shape[1]
    h1p = _round_up(h1, 128)     # 500 -> 512
    actp = _round_up(act, 128)   # 4   -> 128 (matmul lanes only; not stored)

    w1p = jnp.zeros((in_dim, h1p), jnp.float32).at[:, :h1].set(w1)
    b1p = jnp.zeros((1, h1p), jnp.float32).at[:, :h1].set(b1)
    w2p = jnp.zeros((h1p, h2), jnp.float32).at[:h1, :].set(w2)
    b2p = b2.reshape(1, h2).astype(jnp.float32)
    w3p = jnp.zeros((h2, actp), jnp.float32).at[:, :act].set(w3)
    b3p = jnp.zeros((1, actp), jnp.float32).at[:, :act].set(b3)

    return (w1p.astype(weight_dtype), b1p,
            w2p.astype(weight_dtype), b2p,
            w3p.astype(weight_dtype), b3p)


# ----------------------------------------------------------------------------- reference
def mu_reference(x, prepared_params, action_dim):
    """Same math path as the kernel: bf16 operands, f32 accumulation, f32
    elementwise."""
    w1, b1, w2, b2, w3, b3 = prepared_params
    xb = x.astype(jnp.bfloat16)
    h1 = jax.nn.relu(jnp.dot(xb, w1, preferred_element_type=jnp.float32) + b1)
    h2 = jax.nn.relu(jnp.dot(h1.astype(jnp.bfloat16), w2,
                             preferred_element_type=jnp.float32) + b2)
    y = jnp.tanh(jnp.dot(h2.astype(jnp.bfloat16), w3,
                         preferred_element_type=jnp.float32) + b3)
    return y[:, :action_dim]


if __name__ == "__main__":
    key = jax.random.PRNGKey(0)
    k_x, k_p = jax.random.split(key)

    batch, input_dim, action_dim = 2, 16, 4
    x = jax.random.normal(k_x, (batch, input_dim), jnp.float32)

    params = init_params(k_p, input_dim, action_dim)
    prepared = prepare_params(params, weight_dtype=jnp.bfloat16)

    out = jax.block_until_ready(mu_forward(x, prepared, action_dim))

    ref = mu_reference(x, prepared, action_dim)
    assert out.shape == (batch, action_dim)
    # bf16 matmul operands -> compare against a bf16-matched reference with a
    # correspondingly relaxed tolerance.
    assert jnp.allclose(out, ref, atol=1e-2, rtol=1e-2), "mismatch vs reference"

    print("KERNEL_OK")
</pallas_src>

<mosaic_0001>
module attributes {stable_mosaic.version = 11 : i64} {
  func.func @mu_kernel(%arg0: i32, %arg1: memref<2x16xf32, #tpu.memory_space<vmem>>, %arg2: memref<16x512xbf16, #tpu.memory_space<vmem>>, %arg3: memref<1x512xf32, #tpu.memory_space<vmem>>, %arg4: memref<512x128xbf16, #tpu.memory_space<vmem>>, %arg5: memref<1x128xf32, #tpu.memory_space<vmem>>, %arg6: memref<128x128xbf16, #tpu.memory_space<vmem>>, %arg7: memref<1x128xf32, #tpu.memory_space<vmem>>, %arg8: memref<2x4xf32, #tpu.memory_space<vmem>>) attributes {dimension_semantics = [#tpu.dimension_semantics<parallel>], iteration_bounds = array<i64: 1>, scalar_prefetch = 0 : i64, scratch_operands = 0 : i64, tpu.core_type = #tpu.core_type<tc>, window_params = [{transform_indices = @transform_0, window_bounds = array<i64: 2, 16>}, {pipeline_mode = #tpu.pipeline_mode<synchronous>, transform_indices = @transform_1, window_bounds = array<i64: 16, 512>}, {pipeline_mode = #tpu.pipeline_mode<synchronous>, transform_indices = @transform_2, window_bounds = array<i64: 1, 512>}, {pipeline_mode = #tpu.pipeline_mode<synchronous>, transform_indices = @transform_3, window_bounds = array<i64: 512, 128>}, {pipeline_mode = #tpu.pipeline_mode<synchronous>, transform_indices = @transform_4, window_bounds = array<i64: 1, 128>}, {pipeline_mode = #tpu.pipeline_mode<synchronous>, transform_indices = @transform_5, window_bounds = array<i64: 128, 128>}, {pipeline_mode = #tpu.pipeline_mode<synchronous>, transform_indices = @transform_6, window_bounds = array<i64: 1, 128>}, {transform_indices = @transform_7, window_bounds = array<i64: 2, 4>}]} {
    %c0 = arith.constant 0 : index
    %c0_0 = arith.constant 0 : index
    %0 = vector.load %arg1[%c0, %c0_0] : memref<2x16xf32, #tpu.memory_space<vmem>>, vector<2x16xf32>
    %1 = arith.truncf %0 : vector<2x16xf32> to vector<2x16xbf16>
    %c0_1 = arith.constant 0 : index
    %c0_2 = arith.constant 0 : index
    %2 = vector.load %arg2[%c0_1, %c0_2] : memref<16x512xbf16, #tpu.memory_space<vmem>>, vector<16x512xbf16>
    %cst = arith.constant dense<0.000000e+00> : vector<2x512xf32>
    %3 = tpu.matmul %1, %2, %cst {dimension_numbers = #tpu.dot_dimension_numbers<[1], [0], [0], [1], [0, 0, 1, 1], [], []>} : vector<2x16xbf16>, vector<16x512xbf16>, vector<2x512xf32> -> vector<2x512xf32>
    %c0_3 = arith.constant 0 : index
    %c0_4 = arith.constant 0 : index
    %4 = vector.load %arg3[%c0_3, %c0_4] : memref<1x512xf32, #tpu.memory_space<vmem>>, vector<1x512xf32>
    %5 = vector.broadcast %4 : vector<1x512xf32> to vector<2x512xf32>
    %6 = arith.addf %3, %5 : vector<2x512xf32>
    %cst_5 = arith.constant 0.000000e+00 : f32
    %7 = vector.broadcast %cst_5 : f32 to vector<2x512xf32>
    %8 = arith.maximumf %6, %7 : vector<2x512xf32>
    %9 = arith.truncf %8 : vector<2x512xf32> to vector<2x512xbf16>
    %c0_6 = arith.constant 0 : index
    %c0_7 = arith.constant 0 : index
    %10 = vector.load %arg4[%c0_6, %c0_7] : memref<512x128xbf16, #tpu.memory_space<vmem>>, vector<512x128xbf16>
    %cst_8 = arith.constant dense<0.000000e+00> : vector<2x128xf32>
    %11 = tpu.matmul %9, %10, %cst_8 {dimension_numbers = #tpu.dot_dimension_numbers<[1], [0], [0], [1], [0, 0, 1, 1], [], []>} : vector<2x512xbf16>, vector<512x128xbf16>, vector<2x128xf32> -> vector<2x128xf32>
    %c0_9 = arith.constant 0 : index
    %c0_10 = arith.constant 0 : index
    %12 = vector.load %arg5[%c0_9, %c0_10] : memref<1x128xf32, #tpu.memory_space<vmem>>, vector<1x128xf32>
    %13 = vector.broadcast %12 : vector<1x128xf32> to vector<2x128xf32>
    %14 = arith.addf %11, %13 : vector<2x128xf32>
    %cst_11 = arith.constant 0.000000e+00 : f32
    %15 = vector.broadcast %cst_11 : f32 to vector<2x128xf32>
    %16 = arith.maximumf %14, %15 : vector<2x128xf32>
    %17 = arith.truncf %16 : vector<2x128xf32> to vector<2x128xbf16>
    %c0_12 = arith.constant 0 : index
    %c0_13 = arith.constant 0 : index
    %18 = vector.load %arg6[%c0_12, %c0_13] : memref<128x128xbf16, #tpu.memory_space<vmem>>, vector<128x128xbf16>
    %cst_14 = arith.constant dense<0.000000e+00> : vector<2x128xf32>
    %19 = tpu.matmul %17, %18, %cst_14 {dimension_numbers = #tpu.dot_dimension_numbers<[1], [0], [0], [1], [0, 0, 1, 1], [], []>} : vector<2x128xbf16>, vector<128x128xbf16>, vector<2x128xf32> -> vector<2x128xf32>
    %c0_15 = arith.constant 0 : index
    %c0_16 = arith.constant 0 : index
    %20 = vector.load %arg7[%c0_15, %c0_16] : memref<1x128xf32, #tpu.memory_space<vmem>>, vector<1x128xf32>
    %21 = vector.broadcast %20 : vector<1x128xf32> to vector<2x128xf32>
    %22 = arith.addf %19, %21 : vector<2x128xf32>
    %23 = math.tanh %22 : vector<2x128xf32>
    %24 = vector.extract_strided_slice %23 {offsets = [0, 0], sizes = [2, 4], strides = [1, 1]} : vector<2x128xf32> to vector<2x4xf32>
    %c0_17 = arith.constant 0 : index
    %c0_18 = arith.constant 0 : index
    %25 = vector.load %arg8[%c0_17, %c0_18] : memref<2x4xf32, #tpu.memory_space<vmem>>, vector<2x4xf32>
    tpu.vector_store %arg8[%c0_17, %c0_18], %24 {strides = array<i32>} : memref<2x4xf32, #tpu.memory_space<vmem>>, vector<2x4xf32>,
    return
  }
  func.func @transform_0(%arg0: i32) -> (i32, i32) {
    %c0_i32 = arith.constant 0 : i32
    %c0_i32_0 = arith.constant 0 : i32
    return %arg0, %c0_i32 : i32, i32
  }
  func.func @transform_1(%arg0: i32) -> (i32, i32) {
    %c0_i32 = arith.constant 0 : i32
    %c0_i32_0 = arith.constant 0 : i32
    %c0_i32_1 = arith.constant 0 : i32
    return %c0_i32, %c0_i32_0 : i32, i32
  }
  func.func @transform_2(%arg0: i32) -> (i32, i32) {
    %c0_i32 = arith.constant 0 : i32
    %c0_i32_0 = arith.constant 0 : i32
    %c0_i32_1 = arith.constant 0 : i32
    return %c0_i32, %c0_i32_0 : i32, i32
  }
  func.func @transform_3(%arg0: i32) -> (i32, i32) {
    %c0_i32 = arith.constant 0 : i32
    %c0_i32_0 = arith.constant 0 : i32
    %c0_i32_1 = arith.constant 0 : i32
    return %c0_i32, %c0_i32_0 : i32, i32
  }
  func.func @transform_4(%arg0: i32) -> (i32, i32) {
    %c0_i32 = arith.constant 0 : i32
    %c0_i32_0 = arith.constant 0 : i32
    %c0_i32_1 = arith.constant 0 : i32
    return %c0_i32, %c0_i32_0 : i32, i32
  }
  func.func @transform_5(%arg0: i32) -> (i32, i32) {
    %c0_i32 = arith.constant 0 : i32
    %c0_i32_0 = arith.constant 0 : i32
    %c0_i32_1 = arith.constant 0 : i32
    return %c0_i32, %c0_i32_0 : i32, i32
  }
  func.func @transform_6(%arg0: i32) -> (i32, i32) {
    %c0_i32 = arith.constant 0 : i32
    %c0_i32_0 = arith.constant 0 : i32
    %c0_i32_1 = arith.constant 0 : i32
    return %c0_i32, %c0_i32_0 : i32, i32
  }
  func.func @transform_7(%arg0: i32) -> (i32, i32) {
    %c0_i32 = arith.constant 0 : i32
    %c0_i32_0 = arith.constant 0 : i32
    return %arg0, %c0_i32 : i32, i32
  }
}

</mosaic_0001>

<llo_original>
// kernel: tpu_custom_call.1
$region0: #{tpu_custom_call.1}
  #allocation0 [shape = 'u32[]', space=smem, size = 0x4, offset = 0x4, fixed_abs, tag = 'smem constant byte address 0x4 - core index']
  #allocation1 [shape = 'u32[72,128]{1,0:T(1,128)}', space=vmem, size = 0x9000, scoped, tag = 'internal scratch']
  %s0 = inlined_call_operand.hbm [shape: f32[2,16], index: 0, kind: input, shape index: {}]
  %s1 = inlined_call_operand.hbm [shape: bf16[16,512], index: 1, kind: input, shape index: {}]
  %s2 = inlined_call_operand.hbm [shape: f32[1,512], index: 2, kind: input, shape index: {}]
  %s3 = inlined_call_operand.hbm [shape: bf16[512,128], index: 3, kind: input, shape index: {}]
  %s4 = inlined_call_operand.vmem [shape: f32[1,128], index: 4, kind: input, shape index: {}]
  %s5 = inlined_call_operand.hbm [shape: bf16[128,128], index: 5, kind: input, shape index: {}]
  %s6 = inlined_call_operand.vmem [shape: f32[1,128], index: 6, kind: input, shape index: {}]
  %s7 = inlined_call_operand.hbm [shape: f32[2,4], index: 7, kind: output, shape index: {}]
  %s8 = sld [smem:[#allocation0]]
  $region58: #{tpu_custom_call.1} parent=0
    _
  %s10 = ssub.s32 1, %s8
  %s11 = scalar_select 0, %s10, %s8
  $region1: #{tpu_custom_call.1} parent=0
    #allocation2 [shape = 'u8[1024]{0}', space=vmem, size = 0x400, scoped, tag = 'input window, operand 0, single buffered']
    #allocation3 [shape = 's32[1]{0}', space=sflag, size = 0x4, scoped, tag = 'scoped memory for tpu_custom_call.1']
    #allocation4 [shape = 's32[1]{0}', space=sflag, size = 0x4, scoped, tag = 'scoped memory for tpu_custom_call.1']
    #allocation5 [shape = 'u8[16384]{0}', space=vmem, size = 0x4000, scoped, tag = 'input window, operand 1, single buffered']
    #allocation6 [shape = 's32[1]{0}', space=sflag, size = 0x4, scoped, tag = 'scoped memory for tpu_custom_call.1']
    #allocation7 [shape = 'u8[2048]{0}', space=vmem, size = 0x800, scoped, tag = 'input window, operand 2, single buffered']
    #allocation8 [shape = 'u8[131072]{0}', space=vmem, size = 0x20000, scoped, tag = 'input window, operand 3, single buffered']
    #allocation9 [shape = 's32[1]{0}', space=sflag, size = 0x4, scoped, tag = 'scoped memory for tpu_custom_call.1']
    #allocation10 [shape = 'u8[32768]{0}', space=vmem, size = 0x8000, scoped, tag = 'input window, operand 5, single buffered']
    #allocation11 [shape = 'u8[1024]{0}', space=vmem, size = 0x400, scoped, tag = 'output window, operand 0, single buffered']
    %12 = vsyncpa [#allocation3], 0
    %13 = vsyncpa [#allocation6], 0
    %14 = vsyncpa [#allocation9], 0
    %15 = vsyncpa [#allocation4], 0
    // Predicated region
    $region2: #{tpu_custom_call.1} parent=1 // pred_check
      _
    $region3: #{tpu_custom_call.1} parent=1 // pred_check_branch
      %17 = sbr.rel (0) target = $region5
    $region4: #{tpu_custom_call.1} parent=1 // pred_region
      %19 = vsyncadd [#allocation3], 0
      %s21 = sshll.u32 %s0, 4
      %s22 = int_to_ptr.hbm [resolvable:$true] %s21
      %s23 = sshll.u32 [#allocation2], 4
      %s24 = int_to_ptr.vmem [resolvable:$true] %s23
      %26 = dma.hbm_to_vmem [thread:$0]  %s22, 32, %s24, [#allocation3]
    $region5: #{tpu_custom_call.1} parent=1 // pred_fallthru
      _
    // Predicated region
    $region6: #{tpu_custom_call.1} parent=1 // pred_check
      _
    $region7: #{tpu_custom_call.1} parent=1 // pred_check_branch
      %28 = sbr.rel (0) target = $region9
    $region8: #{tpu_custom_call.1} parent=1 // pred_region
      %30 = vsyncadd [#allocation6], 0
      %s31 = sshll.u32 %s1, 4
      %s32 = int_to_ptr.hbm [resolvable:$true] %s31
      %s33 = sshll.u32 [#allocation5], 4
      %s34 = int_to_ptr.vmem [resolvable:$true] %s33
      %39 = dma.hbm_to_vmem [thread:$0]  %s32, 512, %s34, [#allocation6], 256, 256, 16
    $region9: #{tpu_custom_call.1} parent=1 // pred_fallthru
      _
    // Predicated region
    $region10: #{tpu_custom_call.1} parent=1 // pred_check
      _
    $region11: #{tpu_custom_call.1} parent=1 // pred_check_branch
      %41 = sbr.rel (0) target = $region13
    $region12: #{tpu_custom_call.1} parent=1 // pred_region
      %43 = vsyncadd [#allocation6], 0
      %s45 = sshll.u32 %s2, 4
      %s46 = int_to_ptr.hbm [resolvable:$true] %s45
      %s47 = sshll.u32 [#allocation7], 4
      %s48 = int_to_ptr.vmem [resolvable:$true] %s47
      %50 = dma.hbm_to_vmem [thread:$0]  %s46, 64, %s48, [#allocation6]
    $region13: #{tpu_custom_call.1} parent=1 // pred_fallthru
      _
    // Predicated region
    $region14: #{tpu_custom_call.1} parent=1 // pred_check
      _
    $region15: #{tpu_custom_call.1} parent=1 // pred_check_branch
      %52 = sbr.rel (0) target = $region17
    $region16: #{tpu_custom_call.1} parent=1 // pred_region
      %54 = vsyncadd [#allocation9], 0
      %s55 = sshll.u32 %s3, 4
      %s56 = int_to_ptr.hbm [resolvable:$true] %s55
      %s57 = sshll.u32 [#allocation8], 4
      %s58 = int_to_ptr.vmem [resolvable:$true] %s57
      %63 = dma.hbm_to_vmem [thread:$0]  %s56, 4096, %s58, [#allocation9], 64, 64, 4
    $region17: #{tpu_custom_call.1} parent=1 // pred_fallthru
      _
    // Predicated region
    $region18: #{tpu_custom_call.1} parent=1 // pred_check
      _
    $region19: #{tpu_custom_call.1} parent=1 // pred_check_branch
      %65 = sbr.rel (0) target = $region21
    $region20: #{tpu_custom_call.1} parent=1 // pred_region
      _
    $region21: #{tpu_custom_call.1} parent=1 // pred_fallthru
      _
    // Predicated region
    $region22: #{tpu_custom_call.1} parent=1 // pred_check
      _
    $region23: #{tpu_custom_call.1} parent=1 // pred_check_branch
      %67 = sbr.rel (0) target = $region25
    $region24: #{tpu_custom_call.1} parent=1 // pred_region
      %69 = vsyncadd [#allocation9], 0
      %s70 = sshll.u32 %s5, 4
      %s71 = int_to_ptr.hbm [resolvable:$true] %s70
      %s72 = sshll.u32 [#allocation10], 4
      %s73 = int_to_ptr.vmem [resolvable:$true] %s72
      %78 = dma.hbm_to_vmem [thread:$0]  %s71, 1024, %s73, [#allocation9], 64, 64, 4
    $region25: #{tpu_custom_call.1} parent=1 // pred_fallthru
      _
    // Predicated region
    $region26: #{tpu_custom_call.1} parent=1 // pred_check
      _
    $region27: #{tpu_custom_call.1} parent=1 // pred_check_branch
      %80 = sbr.rel (0) target = $region29
    $region28: #{tpu_custom_call.1} parent=1 // pred_region
      _
    $region29: #{tpu_custom_call.1} parent=1 // pred_fallthru
      _
    // Predicated region
    $region30: #{tpu_custom_call.1} parent=1 // pred_check
      _
    $region31: #{tpu_custom_call.1} parent=1 // pred_check_branch
      %82 = sbr.rel (0) target = $region33
    $region32: #{tpu_custom_call.1} parent=1 // pred_region
      %84 = dma.done [#allocation3], 32
    $region33: #{tpu_custom_call.1} parent=1 // pred_fallthru
      _
    // Predicated region
    $region34: #{tpu_custom_call.1} parent=1 // pred_check
      _
    $region35: #{tpu_custom_call.1} parent=1 // pred_check_branch
      %86 = sbr.rel (0) target = $region37
    $region36: #{tpu_custom_call.1} parent=1 // pred_region
      %88 = dma.done [#allocation6], 512
    $region37: #{tpu_custom_call.1} parent=1 // pred_fallthru
      _
    // Predicated region
    $region38: #{tpu_custom_call.1} parent=1 // pred_check
      _
    $region39: #{tpu_custom_call.1} parent=1 // pred_check_branch
      %90 = sbr.rel (0) target = $region41
    $region40: #{tpu_custom_call.1} parent=1 // pred_region
      %92 = dma.done [#allocation6], 64
    $region41: #{tpu_custom_call.1} parent=1 // pred_fallthru
      _
    // Predicated region
    $region42: #{tpu_custom_call.1} parent=1 // pred_check
      _
    $region43: #{tpu_custom_call.1} parent=1 // pred_check_branch
      %94 = sbr.rel (0) target = $region45
    $region44: #{tpu_custom_call.1} parent=1 // pred_region
      %96 = dma.done [#allocation9], 4096
    $region45: #{tpu_custom_call.1} parent=1 // pred_fallthru
      _
    // Predicated region
    $region46: #{tpu_custom_call.1} parent=1 // pred_check
      _
    $region47: #{tpu_custom_call.1} parent=1 // pred_check_branch
      %98 = sbr.rel (0) target = $region49
    $region48: #{tpu_custom_call.1} parent=1 // pred_region
      %100 = dma.done [#allocation9], 1024
    $region49: #{tpu_custom_call.1} parent=1 // pred_fallthru
      _
    %v102 = vld [vmem:[#allocation2] sm:$0x3]
    %v103 = vpack.c.bf16 %v102, %v102
    %v104 = vld [vmem:[#allocation5] sm:$0xff]
    %v105 = vld [vmem:[#allocation5 + $0x8] sm:$0xff]
    %v106 = vld [vmem:[#allocation5 + $0x10] sm:$0xff]
    %v107 = vld [vmem:[#allocation5 + $0x18] sm:$0xff]
    %v108 = vld [vmem:[#allocation7] sm:$0xf]
    %v110 = vperm.slane %v108, 0
    %v111 = vperm.slane %v108, 1
    %v112 = vperm.slane %v108, 2
    %v113 = vperm.slane %v108, 3
    %v122 = vunpack.c.l.b16 %v104
    %v123 = vunpack.c.h.b16 %v104
    %v124 = vunpack.c.l.b16 %v105
    %v125 = vunpack.c.h.b16 %v105
    %v126 = vunpack.c.l.b16 %v106
    %v127 = vunpack.c.h.b16 %v106
    %v128 = vunpack.c.l.b16 %v107
    %v129 = vunpack.c.h.b16 %v107
    %v130 = vpack.c.b16 %v126, %v122
    %v131 = vpack.c.b16 %v127, %v123
    %v132 = vpack.c.b16 %v128, %v124
    %v133 = vpack.c.b16 %v129, %v125
    %vm138 = vcmask 130048
    %v140 = vsel %vm138, %v103, 0
    %142 = vmatpush.bf16.msra.mxu0 0
    %143 = vmatpush.bf16.msra.mxu0 0
    %144 = vmatpush.bf16.msra.mxu0 0
    %145 = vmatpush.bf16.msra.mxu0 0
    %146 = vmatpush.bf16.msra.mxu0 0
    %147 = vmatpush.bf16.msra.mxu0 0
    %148 = vmatpush.bf16.msra.mxu0 0
    %149 = vmatpush.bf16.msra.mxu0 %v130
    %150 = vmatmul.bf16.gmra.mxu0 %v140
    %v151 = vpop.f32.mrf.mxu0
    %v152 = vadd.f32 %v110, %v151
    %v153 = vpop.f32.mrf.mxu0
    %154 = vdwg.mxu0
    %155 = vmatpush.bf16.msra.mxu0 0
    %156 = vmatpush.bf16.msra.mxu0 0
    %157 = vmatpush.bf16.msra.mxu0 0
    %158 = vmatpush.bf16.msra.mxu0 0
    %159 = vmatpush.bf16.msra.mxu0 0
    %160 = vmatpush.bf16.msra.mxu0 0
    %161 = vmatpush.bf16.msra.mxu0 0
    %162 = vmatpush.bf16.msra.mxu0 %v131
    %163 = vmatmul.bf16.gmra.mxu0 %v140
    %v164 = vpop.f32.mrf.mxu0
    %v165 = vadd.f32 %v111, %v164
    %v166 = vpop.f32.mrf.mxu0
    %167 = vdwg.mxu0
    %168 = vmatpush.bf16.msra.mxu0 0
    %169 = vmatpush.bf16.msra.mxu0 0
    %170 = vmatpush.bf16.msra.mxu0 0
    %171 = vmatpush.bf16.msra.mxu0 0
    %172 = vmatpush.bf16.msra.mxu0 0
    %173 = vmatpush.bf16.msra.mxu0 0
    %174 = vmatpush.bf16.msra.mxu0 0
    %175 = vmatpush.bf16.msra.mxu0 %v132
    %176 = vmatmul.bf16.gmra.mxu0 %v140
    %v177 = vpop.f32.mrf.mxu0
    %v178 = vadd.f32 %v112, %v177
    %v179 = vpop.f32.mrf.mxu0
    %180 = vdwg.mxu0
    %181 = vmatpush.bf16.msra.mxu0 0
    %182 = vmatpush.bf16.msra.mxu0 0
    %183 = vmatpush.bf16.msra.mxu0 0
    %184 = vmatpush.bf16.msra.mxu0 0
    %185 = vmatpush.bf16.msra.mxu0 0
    %186 = vmatpush.bf16.msra.mxu0 0
    %187 = vmatpush.bf16.msra.mxu0 0
    %188 = vmatpush.bf16.msra.mxu0 %v133
    %189 = vmatmul.bf16.gmra.mxu0 %v140
    %v190 = vpop.f32.mrf.mxu0
    %v191 = vadd.f32 %v113, %v190
    %v192 = vpop.f32.mrf.mxu0
    %193 = vdwg.mxu0
    %v194 = vmax.f32 %v152, 0.0
    %v195 = vmax.f32 %v165, 0.0
    %v196 = vmax.f32 %v178, 0.0
    %v197 = vmax.f32 %v191, 0.0
    %v198 = vpack.c.bf16 %v194, %v194
    %v199 = vpack.c.bf16 %v195, %v195
    %v200 = vpack.c.bf16 %v196, %v196
    %v201 = vpack.c.bf16 %v197, %v197
    %v202 = vld [vmem:[#allocation8] sm:$0xf]
    %v203 = vld [vmem:[#allocation8 + $0x4] sm:$0xf]
    %v204 = vld [vmem:[#allocation8 + $0x8] sm:$0xf]
    %v205 = vld [vmem:[#allocation8 + $0xc] sm:$0xf]
    %v206 = vld [vmem:[#allocation8 + $0x10] sm:$0xf]
    %v207 = vld [vmem:[#allocation8 + $0x14] sm:$0xf]
    %v208 = vld [vmem:[#allocation8 + $0x18] sm:$0xf]
    %v209 = vld [vmem:[#allocation8 + $0x1c] sm:$0xf]
    %v210 = vld [vmem:[#allocation8 + $0x20] sm:$0xf]
    %v211 = vld [vmem:[#allocation8 + $0x24] sm:$0xf]
    %v212 = vld [vmem:[#allocation8 + $0x28] sm:$0xf]
    %v213 = vld [vmem:[#allocation8 + $0x2c] sm:$0xf]
    %v214 = vld [vmem:[#allocation8 + $0x30] sm:$0xf]
    %v215 = vld [vmem:[#allocation8 + $0x34] sm:$0xf]
    %v216 = vld [vmem:[#allocation8 + $0x38] sm:$0xf]
    %v217 = vld [vmem:[#allocation8 + $0x3c] sm:$0xf]
    %v218 = vld [vmem:[#allocation8 + $0x40] sm:$0xf]
    %v219 = vld [vmem:[#allocation8 + $0x44] sm:$0xf]
    %v220 = vld [vmem:[#allocation8 + $0x48] sm:$0xf]
    %v221 = vld [vmem:[#allocation8 + $0x4c] sm:$0xf]
    %v222 = vld [vmem:[#allocation8 + $0x50] sm:$0xf]
    %v223 = vld [vmem:[#allocation8 + $0x54] sm:$0xf]
    %v224 = vld [vmem:[#allocation8 + $0x58] sm:$0xf]
    %v225 = vld [vmem:[#allocation8 + $0x5c] sm:$0xf]
    %v226 = vld [vmem:[#allocation8 + $0x60] sm:$0xf]
    %v227 = vld [vmem:[#allocation8 + $0x64] sm:$0xf]
    %v228 = vld [vmem:[#allocation8 + $0x68] sm:$0xf]
    %v229 = vld [vmem:[#allocation8 + $0x6c] sm:$0xf]
    %v230 = vld [vmem:[#allocation8 + $0x70] sm:$0xf]
    %v231 = vld [vmem:[#allocation8 + $0x74] sm:$0xf]
    %v232 = vld [vmem:[#allocation8 + $0x78] sm:$0xf]
    %v233 = vld [vmem:[#allocation8 + $0x7c] sm:$0xf]
    %v234 = vld [vmem:[#allocation8 + $0x80] sm:$0xf]
    %v235 = vld [vmem:[#allocation8 + $0x84] sm:$0xf]
    %v236 = vld [vmem:[#allocation8 + $0x88] sm:$0xf]
    %v237 = vld [vmem:[#allocation8 + $0x8c] sm:$0xf]
    %v238 = vld [vmem:[#allocation8 + $0x90] sm:$0xf]
    %v239 = vld [vmem:[#allocation8 + $0x94] sm:$0xf]
    %v240 = vld [vmem:[#allocation8 + $0x98] sm:$0xf]
    %v241 = vld [vmem:[#allocation8 + $0x9c] sm:$0xf]
    %v242 = vld [vmem:[#allocation8 + $0xa0] sm:$0xf]
    %v243 = vld [vmem:[#allocation8 + $0xa4] sm:$0xf]
    %v244 = vld [vmem:[#allocation8 + $0xa8] sm:$0xf]
    %v245 = vld [vmem:[#allocation8 + $0xac] sm:$0xf]
    %v246 = vld [vmem:[#allocation8 + $0xb0] sm:$0xf]
    %v247 = vld [vmem:[#allocation8 + $0xb4] sm:$0xf]
    %v248 = vld [vmem:[#allocation8 + $0xb8] sm:$0xf]
    %v249 = vld [vmem:[#allocation8 + $0xbc] sm:$0xf]
    %v250 = vld [vmem:[#allocation8 + $0xc0] sm:$0xf]
    %v251 = vld [vmem:[#allocation8 + $0xc4] sm:$0xf]
    %v252 = vld [vmem:[#allocation8 + $0xc8] sm:$0xf]
    %v253 = vld [vmem:[#allocation8 + $0xcc] sm:$0xf]
    %v254 = vld [vmem:[#allocation8 + $0xd0] sm:$0xf]
    %v255 = vld [vmem:[#allocation8 + $0xd4] sm:$0xf]
    %v256 = vld [vmem:[#allocation8 + $0xd8] sm:$0xf]
    %v257 = vld [vmem:[#allocation8 + $0xdc] sm:$0xf]
    %v258 = vld [vmem:[#allocation8 + $0xe0] sm:$0xf]
    %v259 = vld [vmem:[#allocation8 + $0xe4] sm:$0xf]
    %v260 = vld [vmem:[#allocation8 + $0xe8] sm:$0xf]
    %v261 = vld [vmem:[#allocation8 + $0xec] sm:$0xf]
    %v262 = vld [vmem:[#allocation8 + $0xf0] sm:$0xf]
    %v263 = vld [vmem:[#allocation8 + $0xf4] sm:$0xf]
    %v264 = vld [vmem:[#allocation8 + $0xf8] sm:$0xf]
    %v265 = vld [vmem:[#allocation8 + $0xfc] sm:$0xf]
    %v266 = vld [vmem:[%s4] sm:$0x1]
    %v268 = vperm.slane %v266, 0
    %v334 = vunpack.c.l.b16 %v202
    %v335 = vunpack.c.l.b16 %v203
    %v336 = vunpack.c.l.b16 %v204
    %v337 = vunpack.c.l.b16 %v205
    %v338 = vunpack.c.l.b16 %v206
    %v339 = vunpack.c.l.b16 %v207
    %v340 = vunpack.c.l.b16 %v208
    %v341 = vunpack.c.l.b16 %v209
    %v342 = vunpack.c.l.b16 %v210
    %v343 = vunpack.c.l.b16 %v211
    %v344 = vunpack.c.l.b16 %v212
    %v345 = vunpack.c.l.b16 %v213
    %v346 = vunpack.c.l.b16 %v214
    %v347 = vunpack.c.l.b16 %v215
    %v348 = vunpack.c.l.b16 %v216
    %v349 = vunpack.c.l.b16 %v217
    %v350 = vunpack.c.l.b16 %v218
    %v351 = vunpack.c.l.b16 %v219
    %v352 = vunpack.c.l.b16 %v220
    %v353 = vunpack.c.l.b16 %v221
    %v354 = vunpack.c.l.b16 %v222
    %v355 = vunpack.c.l.b16 %v223
    %v356 = vunpack.c.l.b16 %v224
    %v357 = vunpack.c.l.b16 %v225
    %v358 = vunpack.c.l.b16 %v226
    %v359 = vunpack.c.l.b16 %v227
    %v360 = vunpack.c.l.b16 %v228
    %v361 = vunpack.c.l.b16 %v229
    %v362 = vunpack.c.l.b16 %v230
    %v363 = vunpack.c.l.b16 %v231
    %v364 = vunpack.c.l.b16 %v232
    %v365 = vunpack.c.l.b16 %v233
    %v366 = vunpack.c.l.b16 %v234
    %v367 = vunpack.c.l.b16 %v235
    %v368 = vunpack.c.l.b16 %v236
    %v369 = vunpack.c.l.b16 %v237
    %v370 = vunpack.c.l.b16 %v238
    %v371 = vunpack.c.l.b16 %v239
    %v372 = vunpack.c.l.b16 %v240
    %v373 = vunpack.c.l.b16 %v241
    %v374 = vunpack.c.l.b16 %v242
    %v375 = vunpack.c.l.b16 %v243
    %v376 = vunpack.c.l.b16 %v244
    %v377 = vunpack.c.l.b16 %v245
    %v378 = vunpack.c.l.b16 %v246
    %v379 = vunpack.c.l.b16 %v247
    %v380 = vunpack.c.l.b16 %v248
    %v381 = vunpack.c.l.b16 %v249
    %v382 = vunpack.c.l.b16 %v250
    %v383 = vunpack.c.l.b16 %v251
    %v384 = vunpack.c.l.b16 %v252
    %v385 = vunpack.c.l.b16 %v253
    %v386 = vunpack.c.l.b16 %v254
    %v387 = vunpack.c.l.b16 %v255
    %v388 = vunpack.c.l.b16 %v256
    %v389 = vunpack.c.l.b16 %v257
    %v390 = vunpack.c.l.b16 %v258
    %v391 = vunpack.c.l.b16 %v259
    %v392 = vunpack.c.l.b16 %v260
    %v393 = vunpack.c.l.b16 %v261
    %v394 = vunpack.c.l.b16 %v262
    %v395 = vunpack.c.l.b16 %v263
    %v396 = vunpack.c.l.b16 %v264
    %v397 = vunpack.c.l.b16 %v265
    %v398 = vpack.c.b16 %v335, %v334
    %v399 = vpack.c.b16 %v337, %v336
    %v400 = vpack.c.b16 %v339, %v338
    %v401 = vpack.c.b16 %v341, %v340
    %v402 = vpack.c.b16 %v343, %v342
    %v403 = vpack.c.b16 %v345, %v344
    %v404 = vpack.c.b16 %v347, %v346
    %v405 = vpack.c.b16 %v349, %v348
    %v406 = vpack.c.b16 %v351, %v350
    %v407 = vpack.c.b16 %v353, %v352
    %v408 = vpack.c.b16 %v355, %v354
    %v409 = vpack.c.b16 %v357, %v356
    %v410 = vpack.c.b16 %v359, %v358
    %v411 = vpack.c.b16 %v361, %v360
    %v412 = vpack.c.b16 %v363, %v362
    %v413 = vpack.c.b16 %v365, %v364
    %v414 = vpack.c.b16 %v367, %v366
    %v415 = vpack.c.b16 %v369, %v368
    %v416 = vpack.c.b16 %v371, %v370
    %v417 = vpack.c.b16 %v373, %v372
    %v418 = vpack.c.b16 %v375, %v374
    %v419 = vpack.c.b16 %v377, %v376
    %v420 = vpack.c.b16 %v379, %v378
    %v421 = vpack.c.b16 %v381, %v380
    %v422 = vpack.c.b16 %v383, %v382
    %v423 = vpack.c.b16 %v385, %v384
    %v424 = vpack.c.b16 %v387, %v386
    %v425 = vpack.c.b16 %v389, %v388
    %v426 = vpack.c.b16 %v391, %v390
    %v427 = vpack.c.b16 %v393, %v392
    %v428 = vpack.c.b16 %v395, %v394
    %v429 = vpack.c.b16 %v397, %v396
    %462 = vmatpush.bf16.msra.mxu0 %v405
    %463 = vmatpush.bf16.msra.mxu0 %v404
    %464 = vmatpush.bf16.msra.mxu0 %v403
    %465 = vmatpush.bf16.msra.mxu0 %v402
    %466 = vmatpush.bf16.msra.mxu0 %v401
    %467 = vmatpush.bf16.msra.mxu0 %v400
    %468 = vmatpush.bf16.msra.mxu0 %v399
    %469 = vmatpush.bf16.msra.mxu0 %v398
    %470 = vmatmul.bf16.gmra.mxu0 %v198
    %v471 = vpop.f32.mrf.mxu0
    %v472 = vadd.f32 %v268, %v471
    %v473 = vpop.f32.mrf.mxu0
    %474 = vdwg.mxu0
    %475 = vmatpush.bf16.msra.mxu0 %v413
    %476 = vmatpush.bf16.msra.mxu0 %v412
    %477 = vmatpush.bf16.msra.mxu0 %v411
    %478 = vmatpush.bf16.msra.mxu0 %v410
    %479 = vmatpush.bf16.msra.mxu0 %v409
    %480 = vmatpush.bf16.msra.mxu0 %v408
    %481 = vmatpush.bf16.msra.mxu0 %v407
    %482 = vmatpush.bf16.msra.mxu0 %v406
    %483 = vmatmul.bf16.gmra.mxu0 %v199
    %v484 = vpop.f32.mrf.mxu0
    %v485 = vadd.f32 %v472, %v484
    %v486 = vpop.f32.mrf.mxu0
    %487 = vdwg.mxu0
    %488 = vmatpush.bf16.msra.mxu0 %v421
    %489 = vmatpush.bf16.msra.mxu0 %v420
    %490 = vmatpush.bf16.msra.mxu0 %v419
    %491 = vmatpush.bf16.msra.mxu0 %v418
    %492 = vmatpush.bf16.msra.mxu0 %v417
    %493 = vmatpush.bf16.msra.mxu0 %v416
    %494 = vmatpush.bf16.msra.mxu0 %v415
    %495 = vmatpush.bf16.msra.mxu0 %v414
    %496 = vmatmul.bf16.gmra.mxu0 %v200
    %v497 = vpop.f32.mrf.mxu0
    %v498 = vadd.f32 %v485, %v497
    %v499 = vpop.f32.mrf.mxu0
    %500 = vdwg.mxu0
    %501 = vmatpush.bf16.msra.mxu0 %v429
    %502 = vmatpush.bf16.msra.mxu0 %v428
    %503 = vmatpush.bf16.msra.mxu0 %v427
    %504 = vmatpush.bf16.msra.mxu0 %v426
    %505 = vmatpush.bf16.msra.mxu0 %v425
    %506 = vmatpush.bf16.msra.mxu0 %v424
    %507 = vmatpush.bf16.msra.mxu0 %v423
    %508 = vmatpush.bf16.msra.mxu0 %v422
    %509 = vmatmul.bf16.gmra.mxu0 %v201
    %v510 = vpop.f32.mrf.mxu0
    %v511 = vadd.f32 %v498, %v510
    %v512 = vpop.f32.mrf.mxu0
    %513 = vdwg.mxu0
    %v514 = vmax.f32 %v511, 0.0
    %v515 = vpack.c.bf16 %v514, %v514
    %v516 = vld [vmem:[#allocation10] sm:$0xf]
    %v517 = vld [vmem:[#allocation10 + $0x4] sm:$0xf]
    %v518 = vld [vmem:[#allocation10 + $0x8] sm:$0xf]
    %v519 = vld [vmem:[#allocation10 + $0xc] sm:$0xf]
    %v520 = vld [vmem:[#allocation10 + $0x10] sm:$0xf]
    %v521 = vld [vmem:[#allocation10 + $0x14] sm:$0xf]
    %v522 = vld [vmem:[#allocation10 + $0x18] sm:$0xf]
    %v523 = vld [vmem:[#allocation10 + $0x1c] sm:$0xf]
    %v524 = vld [vmem:[#allocation10 + $0x20] sm:$0xf]
    %v525 = vld [vmem:[#allocation10 + $0x24] sm:$0xf]
    %v526 = vld [vmem:[#allocation10 + $0x28] sm:$0xf]
    %v527 = vld [vmem:[#allocation10 + $0x2c] sm:$0xf]
    %v528 = vld [vmem:[#allocation10 + $0x30] sm:$0xf]
    %v529 = vld [vmem:[#allocation10 + $0x34] sm:$0xf]
    %v530 = vld [vmem:[#allocation10 + $0x38] sm:$0xf]
    %v531 = vld [vmem:[#allocation10 + $0x3c] sm:$0xf]
    %v532 = vld [vmem:[%s6] sm:$0x1]
    %v534 = vperm.slane %v532, 0
    %v552 = vunpack.c.l.b16 %v516
    %v553 = vunpack.c.l.b16 %v517
    %v554 = vunpack.c.l.b16 %v518
    %v555 = vunpack.c.l.b16 %v519
    %v556 = vunpack.c.l.b16 %v520
    %v557 = vunpack.c.l.b16 %v521
    %v558 = vunpack.c.l.b16 %v522
    %v559 = vunpack.c.l.b16 %v523
    %v560 = vunpack.c.l.b16 %v524
    %v561 = vunpack.c.l.b16 %v525
    %v562 = vunpack.c.l.b16 %v526
    %v563 = vunpack.c.l.b16 %v527
    %v564 = vunpack.c.l.b16 %v528
    %v565 = vunpack.c.l.b16 %v529
    %v566 = vunpack.c.l.b16 %v530
    %v567 = vunpack.c.l.b16 %v531
    %v568 = vpack.c.b16 %v553, %v552
    %v569 = vpack.c.b16 %v555, %v554
    %v570 = vpack.c.b16 %v557, %v556
    %v571 = vpack.c.b16 %v559, %v558
    %v572 = vpack.c.b16 %v561, %v560
    %v573 = vpack.c.b16 %v563, %v562
    %v574 = vpack.c.b16 %v565, %v564
    %v575 = vpack.c.b16 %v567, %v566
    %584 = vmatpush.bf16.msra.mxu0 %v575
    %585 = vmatpush.bf16.msra.mxu0 %v574
    %586 = vmatpush.bf16.msra.mxu0 %v573
    %587 = vmatpush.bf16.msra.mxu0 %v572
    %588 = vmatpush.bf16.msra.mxu0 %v571
    %589 = vmatpush.bf16.msra.mxu0 %v570
    %590 = vmatpush.bf16.msra.mxu0 %v569
    %591 = vmatpush.bf16.msra.mxu0 %v568
    %592 = vmatmul.bf16.gmra.mxu0 %v515
    %v593 = vpop.f32.mrf.mxu0
    %v594 = vadd.f32 %v534, %v593
    %v595 = vpop.f32.mrf.mxu0
    %596 = vdwg.mxu0
    %v597 = vtanh.pop %v594
    %vm598 = vcmask 25600
    %599 = vst.msk [vmem:[#allocation11] sm:$0x3] %vm598, %v597
    // Predicated region
    $region50: #{tpu_custom_call.1} parent=1 // pred_check
      _
    $region51: #{tpu_custom_call.1} parent=1 // pred_check_branch
      %601 = sbr.rel (0) target = $region53
    $region52: #{tpu_custom_call.1} parent=1 // pred_region
      %603 = vsyncadd [#allocation4], 0
      %s605 = sshll.u32 [#allocation11], 4
      %s606 = int_to_ptr.vmem [resolvable:$true] %s605
      %s607 = sshll.u32 %s7, 4
      %s608 = int_to_ptr.hbm [resolvable:$true] %s607
      %610 = dma.vmem_to_hbm [thread:$0]  %s606, 32, %s608, [#allocation4]
    $region53: #{tpu_custom_call.1} parent=1 // pred_fallthru
      _
    // Predicated region
    $region54: #{tpu_custom_call.1} parent=1 // pred_check
      _
    $region55: #{tpu_custom_call.1} parent=1 // pred_check_branch
      %612 = sbr.rel (0) target = $region57
    $region56: #{tpu_custom_call.1} parent=1 // pred_region
      %614 = dma.done [#allocation4], 32
    $region57: #{tpu_custom_call.1} parent=1 // pred_fallthru
      _
    %615 = vsyncpa [#allocation3], 1
    %616 = vsyncpa [#allocation6], 1
    %617 = vsyncpa [#allocation9], 1
    %618 = vsyncpa [#allocation4], 1

</llo_original>
